<compile_context>
chip_gen: v6e
topology: v6e:2x2x1
jax: 0.10.0
libtpu: 0.0.40
codegen_flags: <defaults>
</compile_context>

<pallas_src>
import functools

import jax
import jax.numpy as jnp
import numpy as np
from jax.experimental import pallas as pl
from jax.experimental.pallas import tpu as pltpu


# ----------------------------- Pallas kernel -------------------------------
def _inverted_residual_kernel(x_ref, w1_ref, wdw_ref, w3_ref, mask_ref,
                              b1_ref, b2_ref, b3_ref, o_ref,
                              *, H, W, K, apply_residual, compute_dtype):
    """One batch element per grid step, (C, H*W) layout (spatial on lanes).

    x_ref    : (Cin,  HW)   input image (f32, flattened NCHW)
    w1_ref   : (Cmid, Cin)  1x1 expansion weight * BN1 scale   (compute_dtype)
    wdw_ref  : (Cmid, K*K)  depthwise weight * BN2 scale       (f32)
    w3_ref   : (Cout, Cmid) 1x1 projection weight * BN3 scale  (compute_dtype)
    mask_ref : (K*K, HW)    0/1 border-validity mask per depthwise tap (f32)
    b*_ref   : (C, 1)       folded BN bias per stage (f32)
    o_ref    : (Cout, HW)
    """
    P = K // 2
    HW = H * W

    x = x_ref[...]                                              # (Cin, HW) f32

    # ---- stage 1: 1x1 expansion conv (MXU) + folded BN + ReLU ----
    mid = jnp.dot(w1_ref[...], x.astype(compute_dtype),
                  preferred_element_type=jnp.float32)           # (Cmid, HW)
    mid = jnp.maximum(mid + b1_ref[...], 0.0)

    # ---- stage 2: KxK depthwise conv (stride 1) via lane-rolls + masks ----
    wdw = wdw_ref[...]                                          # (Cmid, K*K)
    masks = mask_ref[...]                                       # (K*K, HW)
    acc = None
    for ky in range(K):
        for kx in range(K):
            tap = ky * K + kx
            off = (ky - P) * W + (kx - P)                       # flat shift
            src = mid if off == 0 else pltpu.roll(
                mid, shift=(-off) % HW, axis=1)                 # XLU rotate
            term = src * wdw[:, tap:tap + 1]                    # (Cmid, HW)
            if not (ky == P and kx == P):                       # center: mask==1
                term = term * masks[tap:tap + 1, :]
            acc = term if acc is None else acc + term
    dw = jnp.maximum(acc + b2_ref[...], 0.0)                    # (Cmid, HW)

    # ---- stage 3: 1x1 projection conv (MXU) + folded BN (no ReLU) ----
    out = jnp.dot(w3_ref[...], dw.astype(compute_dtype),
                  preferred_element_type=jnp.float32)           # (Cout, HW)
    out = out + b3_ref[...]
    if apply_residual:
        out = out + x

    o_ref[...] = out


# ------------------------------- wrapper ------------------------------------
def inverted_residual_pallas(x_nchw, params, *, stride=1,
                             compute_dtype=jnp.bfloat16):
    assert stride == 1, "stride=2 path not implemented in the Pallas kernel"
    N, Cin, H, W = x_nchw.shape
    Cmid = params["w1"].shape[0]
    Cout = params["w3"].shape[0]
    K = params["wdw"].shape[-1]
    HW = H * W
    P = K // 2
    apply_residual = (Cin == Cout and stride == 1)
    eps = 1e-5

    # Flattened NCHW: (N, C, H*W) -- reshape only, no transpose.
    x_flat = x_nchw.reshape(N, Cin, HW).astype(jnp.float32)

    # Fold eval-mode BN into per-channel scale/bias.
    def fold(g, b, m, v):
        s = g / jnp.sqrt(v + eps)
        return s, b - m * s

    s1, b1 = fold(*params["bn1"])
    s2, b2 = fold(*params["bn2"])
    s3, b3 = fold(*params["bn3"])

    # Fold the BN scales straight into the conv weights.
    w1 = (params["w1"][:, :, 0, 0] * s1[:, None]).astype(compute_dtype)   # (Cmid, Cin)
    wdw = (params["wdw"][:, 0].reshape(Cmid, K * K)
           * s2[:, None]).astype(jnp.float32)                             # (Cmid, K*K)
    w3 = (params["w3"][:, :, 0, 0] * s3[:, None]).astype(compute_dtype)   # (Cout, Cmid)

    b1 = b1.astype(jnp.float32)[:, None]                                  # (Cmid, 1)
    b2 = b2.astype(jnp.float32)[:, None]                                  # (Cmid, 1)
    b3 = b3.astype(jnp.float32)[:, None]                                  # (Cout, 1)

    # Precompute 0/1 border-validity masks for every depthwise tap.
    ys, xs = np.meshgrid(np.arange(H), np.arange(W), indexing="ij")
    mask_rows = []
    for ky in range(K):
        for kx in range(K):
            dy, dx = ky - P, kx - P
            valid = ((ys + dy >= 0) & (ys + dy < H) &
                     (xs + dx >= 0) & (xs + dx < W))
            mask_rows.append(valid.reshape(-1))
    masks = jnp.asarray(np.stack(mask_rows).astype(np.float32))           # (K*K, HW)

    kernel = functools.partial(_inverted_residual_kernel, H=H, W=W, K=K,
                               apply_residual=apply_residual,
                               compute_dtype=compute_dtype)

    out_flat = pl.pallas_call(
        kernel,
        out_shape=jax.ShapeDtypeStruct((N, Cout, HW), jnp.float32),
        grid=(N,),
        in_specs=[
            pl.BlockSpec((None, Cin, HW), lambda n: (n, 0, 0)),
            pl.BlockSpec((Cmid, Cin), lambda n: (0, 0)),
            pl.BlockSpec((Cmid, K * K), lambda n: (0, 0)),
            pl.BlockSpec((Cout, Cmid), lambda n: (0, 0)),
            pl.BlockSpec((K * K, HW), lambda n: (0, 0)),
            pl.BlockSpec((Cmid, 1), lambda n: (0, 0)),
            pl.BlockSpec((Cmid, 1), lambda n: (0, 0)),
            pl.BlockSpec((Cout, 1), lambda n: (0, 0)),
        ],
        out_specs=pl.BlockSpec((None, Cout, HW), lambda n: (n, 0, 0)),
        compiler_params=pltpu.CompilerParams(
            dimension_semantics=("parallel",)),
    )(x_flat, w1, wdw, w3, masks, b1, b2, b3)

    return out_flat.reshape(N, Cout, H, W)                                # NCHW


# --------------------------- pure-JAX reference ------------------------------
def inverted_residual_reference(x, Pm, *, stride, apply_residual):
    eps = 1e-5

    def conv(x, w, stride=1, pad=0, groups=1):
        return jax.lax.conv_general_dilated(
            x, w, (stride, stride), [(pad, pad), (pad, pad)],
            dimension_numbers=("NCHW", "OIHW", "NCHW"),
            feature_group_count=groups)

    def bn(y, g, b, m, v):
        g, b, m, v = [t[None, :, None, None] for t in (g, b, m, v)]
        return (y - m) / jnp.sqrt(v + eps) * g + b

    K = Pm["wdw"].shape[-1]
    y = jax.nn.relu(bn(conv(x, Pm["w1"]), *Pm["bn1"]))
    y = jax.nn.relu(bn(conv(y, Pm["wdw"], stride=stride, pad=K // 2,
                            groups=y.shape[1]), *Pm["bn2"]))
    y = bn(conv(y, Pm["w3"]), *Pm["bn3"])
    if apply_residual:
        y = y + x
    return y


# --------------------------------- main --------------------------------------
if __name__ == "__main__":
    N, H, W = 2, 16, 16
    configs = [
        # in_ch == out_ch, stride 1 -> residual path, 3x3 depthwise
        dict(in_ch=8, out_ch=8, kernel_size=3, stride=1, expansion=4),
        # no residual, 5x5 depthwise
        dict(in_ch=8, out_ch=16, kernel_size=5, stride=1, expansion=3),
    ]

    key = jax.random.PRNGKey(0)
    for cfg in configs:
        Cin, Cout = cfg["in_ch"], cfg["out_ch"]
        K, s, ef = cfg["kernel_size"], cfg["stride"], cfg["expansion"]
        Cmid = Cin * ef

        key, sub = jax.random.split(key)
        ks = jax.random.split(sub, 16)
        ki = iter(ks)

        def nrm(shape, scale=0.1):
            return scale * jax.random.normal(next(ki), shape, jnp.float32)

        def bn_params(C):
            g = jax.random.uniform(next(ki), (C,), jnp.float32, 0.5, 1.5)
            b = nrm((C,))
            m = nrm((C,))
            v = jax.random.uniform(next(ki), (C,), jnp.float32, 0.5, 1.5)
            return (g, b, m, v)

        params = {
            "w1": nrm((Cmid, Cin, 1, 1)),
            "wdw": nrm((Cmid, 1, K, K)),
            "w3": nrm((Cout, Cmid, 1, 1)),
            "bn1": bn_params(Cmid),
            "bn2": bn_params(Cmid),
            "bn3": bn_params(Cout),
        }
        x = jax.random.normal(next(ki), (N, Cin, H, W), jnp.float32)

        out = jax.block_until_ready(inverted_residual_pallas(x, params, stride=s))
        ref = jax.block_until_ready(inverted_residual_reference(
            x, params, stride=s, apply_residual=(Cin == Cout and s == 1)))

        assert out.shape == ref.shape == (N, Cout, H, W), (out.shape, ref.shape)
        # bf16 MXU operands with f32 accumulation vs. pure-f32 reference.
        np.testing.assert_allclose(np.asarray(out), np.asarray(ref),
                                   rtol=2e-2, atol=1e-2)

    print("KERNEL_OK")
</pallas_src>

<mosaic_0001>
module attributes {stable_mosaic.version = 11 : i64} {
  func.func @_inverted_residual_kernel(%arg0: i32, %arg1: memref<1x8x256xf32, #tpu.memory_space<vmem>>, %arg2: memref<32x8xbf16, #tpu.memory_space<vmem>>, %arg3: memref<32x9xf32, #tpu.memory_space<vmem>>, %arg4: memref<8x32xbf16, #tpu.memory_space<vmem>>, %arg5: memref<9x256xf32, #tpu.memory_space<vmem>>, %arg6: memref<32x1xf32, #tpu.memory_space<vmem>>, %arg7: memref<32x1xf32, #tpu.memory_space<vmem>>, %arg8: memref<8x1xf32, #tpu.memory_space<vmem>>, %arg9: memref<1x8x256xf32, #tpu.memory_space<vmem>>) attributes {dimension_semantics = [#tpu.dimension_semantics<parallel>], iteration_bounds = array<i64: 2>, scalar_prefetch = 0 : i64, scratch_operands = 0 : i64, tpu.core_type = #tpu.core_type<tc>, window_params = [{transform_indices = @transform_0, window_bounds = array<i64: 1, 8, 256>}, {pipeline_mode = #tpu.pipeline_mode<synchronous>, transform_indices = @transform_1, window_bounds = array<i64: 32, 8>}, {pipeline_mode = #tpu.pipeline_mode<synchronous>, transform_indices = @transform_2, window_bounds = array<i64: 32, 9>}, {pipeline_mode = #tpu.pipeline_mode<synchronous>, transform_indices = @transform_3, window_bounds = array<i64: 8, 32>}, {pipeline_mode = #tpu.pipeline_mode<synchronous>, transform_indices = @transform_4, window_bounds = array<i64: 9, 256>}, {pipeline_mode = #tpu.pipeline_mode<synchronous>, transform_indices = @transform_5, window_bounds = array<i64: 32, 1>}, {pipeline_mode = #tpu.pipeline_mode<synchronous>, transform_indices = @transform_6, window_bounds = array<i64: 32, 1>}, {pipeline_mode = #tpu.pipeline_mode<synchronous>, transform_indices = @transform_7, window_bounds = array<i64: 8, 1>}, {transform_indices = @transform_8, window_bounds = array<i64: 1, 8, 256>}]} {
    %c0 = arith.constant 0 : index
    %c0_0 = arith.constant 0 : index
    %c0_1 = arith.constant 0 : index
    %0 = vector.load %arg1[%c0, %c0_0, %c0_1] : memref<1x8x256xf32, #tpu.memory_space<vmem>>, vector<1x8x256xf32>
    %1 = vector.shape_cast %0 : vector<1x8x256xf32> to vector<8x256xf32>
    %c0_2 = arith.constant 0 : index
    %c0_3 = arith.constant 0 : index
    %2 = vector.load %arg2[%c0_2, %c0_3] : memref<32x8xbf16, #tpu.memory_space<vmem>>, vector<32x8xbf16>
    %3 = arith.truncf %1 : vector<8x256xf32> to vector<8x256xbf16>
    %cst = arith.constant dense<0.000000e+00> : vector<32x256xf32>
    %4 = tpu.matmul %2, %3, %cst {dimension_numbers = #tpu.dot_dimension_numbers<[1], [0], [0], [1], [0, 0, 1, 1], [], []>} : vector<32x8xbf16>, vector<8x256xbf16>, vector<32x256xf32> -> vector<32x256xf32>
    %c0_4 = arith.constant 0 : index
    %c0_5 = arith.constant 0 : index
    %5 = vector.load %arg6[%c0_4, %c0_5] : memref<32x1xf32, #tpu.memory_space<vmem>>, vector<32x1xf32>
    %6 = vector.broadcast %5 : vector<32x1xf32> to vector<32x256xf32>
    %7 = arith.addf %4, %6 : vector<32x256xf32>
    %cst_6 = arith.constant 0.000000e+00 : f32
    %8 = vector.broadcast %cst_6 : f32 to vector<32x256xf32>
    %9 = arith.maximumf %7, %8 : vector<32x256xf32>
    %c0_7 = arith.constant 0 : index
    %c0_8 = arith.constant 0 : index
    %10 = vector.load %arg3[%c0_7, %c0_8] : memref<32x9xf32, #tpu.memory_space<vmem>>, vector<32x9xf32>
    %c0_9 = arith.constant 0 : index
    %c0_10 = arith.constant 0 : index
    %11 = vector.load %arg5[%c0_9, %c0_10] : memref<9x256xf32, #tpu.memory_space<vmem>>, vector<9x256xf32>
    %c17_i32 = arith.constant 17 : i32
    %12 = tpu.dynamic_rotate %9 by %c17_i32 dim 1 : vector<32x256xf32>, i32 -> vector<32x256xf32>
    %13 = vector.extract_strided_slice %10 {offsets = [0, 0], sizes = [32, 1], strides = [1, 1]} : vector<32x9xf32> to vector<32x1xf32>
    %14 = vector.broadcast %13 : vector<32x1xf32> to vector<32x256xf32>
    %15 = arith.mulf %12, %14 : vector<32x256xf32>
    %16 = vector.extract_strided_slice %11 {offsets = [0, 0], sizes = [1, 256], strides = [1, 1]} : vector<9x256xf32> to vector<1x256xf32>
    %17 = vector.broadcast %16 : vector<1x256xf32> to vector<32x256xf32>
    %18 = arith.mulf %15, %17 : vector<32x256xf32>
    %c16_i32 = arith.constant 16 : i32
    %19 = tpu.dynamic_rotate %9 by %c16_i32 dim 1 : vector<32x256xf32>, i32 -> vector<32x256xf32>
    %20 = vector.extract_strided_slice %10 {offsets = [0, 1], sizes = [32, 1], strides = [1, 1]} : vector<32x9xf32> to vector<32x1xf32>
    %21 = vector.broadcast %20 : vector<32x1xf32> to vector<32x256xf32>
    %22 = arith.mulf %19, %21 : vector<32x256xf32>
    %23 = vector.extract_strided_slice %11 {offsets = [1, 0], sizes = [1, 256], strides = [1, 1]} : vector<9x256xf32> to vector<1x256xf32>
    %24 = vector.broadcast %23 : vector<1x256xf32> to vector<32x256xf32>
    %25 = arith.mulf %22, %24 : vector<32x256xf32>
    %26 = arith.addf %18, %25 : vector<32x256xf32>
    %c15_i32 = arith.constant 15 : i32
    %27 = tpu.dynamic_rotate %9 by %c15_i32 dim 1 : vector<32x256xf32>, i32 -> vector<32x256xf32>
    %28 = vector.extract_strided_slice %10 {offsets = [0, 2], sizes = [32, 1], strides = [1, 1]} : vector<32x9xf32> to vector<32x1xf32>
    %29 = vector.broadcast %28 : vector<32x1xf32> to vector<32x256xf32>
    %30 = arith.mulf %27, %29 : vector<32x256xf32>
    %31 = vector.extract_strided_slice %11 {offsets = [2, 0], sizes = [1, 256], strides = [1, 1]} : vector<9x256xf32> to vector<1x256xf32>
    %32 = vector.broadcast %31 : vector<1x256xf32> to vector<32x256xf32>
    %33 = arith.mulf %30, %32 : vector<32x256xf32>
    %34 = arith.addf %26, %33 : vector<32x256xf32>
    %c1_i32 = arith.constant 1 : i32
    %35 = tpu.dynamic_rotate %9 by %c1_i32 dim 1 : vector<32x256xf32>, i32 -> vector<32x256xf32>
    %36 = vector.extract_strided_slice %10 {offsets = [0, 3], sizes = [32, 1], strides = [1, 1]} : vector<32x9xf32> to vector<32x1xf32>
    %37 = vector.broadcast %36 : vector<32x1xf32> to vector<32x256xf32>
    %38 = arith.mulf %35, %37 : vector<32x256xf32>
    %39 = vector.extract_strided_slice %11 {offsets = [3, 0], sizes = [1, 256], strides = [1, 1]} : vector<9x256xf32> to vector<1x256xf32>
    %40 = vector.broadcast %39 : vector<1x256xf32> to vector<32x256xf32>
    %41 = arith.mulf %38, %40 : vector<32x256xf32>
    %42 = arith.addf %34, %41 : vector<32x256xf32>
    %43 = vector.extract_strided_slice %10 {offsets = [0, 4], sizes = [32, 1], strides = [1, 1]} : vector<32x9xf32> to vector<32x1xf32>
    %44 = vector.broadcast %43 : vector<32x1xf32> to vector<32x256xf32>
    %45 = arith.mulf %9, %44 : vector<32x256xf32>
    %46 = arith.addf %42, %45 : vector<32x256xf32>
    %c255_i32 = arith.constant 255 : i32
    %47 = tpu.dynamic_rotate %9 by %c255_i32 dim 1 : vector<32x256xf32>, i32 -> vector<32x256xf32>
    %48 = vector.extract_strided_slice %10 {offsets = [0, 5], sizes = [32, 1], strides = [1, 1]} : vector<32x9xf32> to vector<32x1xf32>
    %49 = vector.broadcast %48 : vector<32x1xf32> to vector<32x256xf32>
    %50 = arith.mulf %47, %49 : vector<32x256xf32>
    %51 = vector.extract_strided_slice %11 {offsets = [5, 0], sizes = [1, 256], strides = [1, 1]} : vector<9x256xf32> to vector<1x256xf32>
    %52 = vector.broadcast %51 : vector<1x256xf32> to vector<32x256xf32>
    %53 = arith.mulf %50, %52 : vector<32x256xf32>
    %54 = arith.addf %46, %53 : vector<32x256xf32>
    %c241_i32 = arith.constant 241 : i32
    %55 = tpu.dynamic_rotate %9 by %c241_i32 dim 1 : vector<32x256xf32>, i32 -> vector<32x256xf32>
    %56 = vector.extract_strided_slice %10 {offsets = [0, 6], sizes = [32, 1], strides = [1, 1]} : vector<32x9xf32> to vector<32x1xf32>
    %57 = vector.broadcast %56 : vector<32x1xf32> to vector<32x256xf32>
    %58 = arith.mulf %55, %57 : vector<32x256xf32>
    %59 = vector.extract_strided_slice %11 {offsets = [6, 0], sizes = [1, 256], strides = [1, 1]} : vector<9x256xf32> to vector<1x256xf32>
    %60 = vector.broadcast %59 : vector<1x256xf32> to vector<32x256xf32>
    %61 = arith.mulf %58, %60 : vector<32x256xf32>
    %62 = arith.addf %54, %61 : vector<32x256xf32>
    %c240_i32 = arith.constant 240 : i32
    %63 = tpu.dynamic_rotate %9 by %c240_i32 dim 1 : vector<32x256xf32>, i32 -> vector<32x256xf32>
    %64 = vector.extract_strided_slice %10 {offsets = [0, 7], sizes = [32, 1], strides = [1, 1]} : vector<32x9xf32> to vector<32x1xf32>
    %65 = vector.broadcast %64 : vector<32x1xf32> to vector<32x256xf32>
    %66 = arith.mulf %63, %65 : vector<32x256xf32>
    %67 = vector.extract_strided_slice %11 {offsets = [7, 0], sizes = [1, 256], strides = [1, 1]} : vector<9x256xf32> to vector<1x256xf32>
    %68 = vector.broadcast %67 : vector<1x256xf32> to vector<32x256xf32>
    %69 = arith.mulf %66, %68 : vector<32x256xf32>
    %70 = arith.addf %62, %69 : vector<32x256xf32>
    %c239_i32 = arith.constant 239 : i32
    %71 = tpu.dynamic_rotate %9 by %c239_i32 dim 1 : vector<32x256xf32>, i32 -> vector<32x256xf32>
    %72 = vector.extract_strided_slice %10 {offsets = [0, 8], sizes = [32, 1], strides = [1, 1]} : vector<32x9xf32> to vector<32x1xf32>
    %73 = vector.broadcast %72 : vector<32x1xf32> to vector<32x256xf32>
    %74 = arith.mulf %71, %73 : vector<32x256xf32>
    %75 = vector.extract_strided_slice %11 {offsets = [8, 0], sizes = [1, 256], strides = [1, 1]} : vector<9x256xf32> to vector<1x256xf32>
    %76 = vector.broadcast %75 : vector<1x256xf32> to vector<32x256xf32>
    %77 = arith.mulf %74, %76 : vector<32x256xf32>
    %78 = arith.addf %70, %77 : vector<32x256xf32>
    %c0_11 = arith.constant 0 : index
    %c0_12 = arith.constant 0 : index
    %79 = vector.load %arg7[%c0_11, %c0_12] : memref<32x1xf32, #tpu.memory_space<vmem>>, vector<32x1xf32>
    %80 = vector.broadcast %79 : vector<32x1xf32> to vector<32x256xf32>
    %81 = arith.addf %78, %80 : vector<32x256xf32>
    %cst_13 = arith.constant 0.000000e+00 : f32
    %82 = vector.broadcast %cst_13 : f32 to vector<32x256xf32>
    %83 = arith.maximumf %81, %82 : vector<32x256xf32>
    %c0_14 = arith.constant 0 : index
    %c0_15 = arith.constant 0 : index
    %84 = vector.load %arg4[%c0_14, %c0_15] : memref<8x32xbf16, #tpu.memory_space<vmem>>, vector<8x32xbf16>
    %85 = arith.truncf %83 : vector<32x256xf32> to vector<32x256xbf16>
    %cst_16 = arith.constant dense<0.000000e+00> : vector<8x256xf32>
    %86 = tpu.matmul %84, %85, %cst_16 {dimension_numbers = #tpu.dot_dimension_numbers<[1], [0], [0], [1], [0, 0, 1, 1], [], []>} : vector<8x32xbf16>, vector<32x256xbf16>, vector<8x256xf32> -> vector<8x256xf32>
    %c0_17 = arith.constant 0 : index
    %c0_18 = arith.constant 0 : index
    %87 = vector.load %arg8[%c0_17, %c0_18] : memref<8x1xf32, #tpu.memory_space<vmem>>, vector<8x1xf32>
    %88 = vector.broadcast %87 : vector<8x1xf32> to vector<8x256xf32>
    %89 = arith.addf %86, %88 : vector<8x256xf32>
    %90 = arith.addf %89, %1 : vector<8x256xf32>
    %c0_19 = arith.constant 0 : index
    %c0_20 = arith.constant 0 : index
    %c0_21 = arith.constant 0 : index
    %91 = vector.load %arg9[%c0_19, %c0_20, %c0_21] : memref<1x8x256xf32, #tpu.memory_space<vmem>>, vector<1x8x256xf32>
    %92 = vector.shape_cast %91 : vector<1x8x256xf32> to vector<8x256xf32>
    %93 = vector.shape_cast %90 : vector<8x256xf32> to vector<1x8x256xf32>
    tpu.vector_store %arg9[%c0_19, %c0_20, %c0_21], %93 {strides = array<i32>} : memref<1x8x256xf32, #tpu.memory_space<vmem>>, vector<1x8x256xf32>,
    return
  }
  func.func @transform_0(%arg0: i32) -> (i32, i32, i32) {
    %c0_i32 = arith.constant 0 : i32
    %c0_i32_0 = arith.constant 0 : i32
    %c0_i32_1 = arith.constant 0 : i32
    return %arg0, %c0_i32, %c0_i32_0 : i32, i32, i32
  }
  func.func @transform_1(%arg0: i32) -> (i32, i32) {
    %c0_i32 = arith.constant 0 : i32
    %c0_i32_0 = arith.constant 0 : i32
    %c0_i32_1 = arith.constant 0 : i32
    return %c0_i32, %c0_i32_0 : i32, i32
  }
  func.func @transform_2(%arg0: i32) -> (i32, i32) {
    %c0_i32 = arith.constant 0 : i32
    %c0_i32_0 = arith.constant 0 : i32
    %c0_i32_1 = arith.constant 0 : i32
    return %c0_i32, %c0_i32_0 : i32, i32
  }
  func.func @transform_3(%arg0: i32) -> (i32, i32) {
    %c0_i32 = arith.constant 0 : i32
    %c0_i32_0 = arith.constant 0 : i32
    %c0_i32_1 = arith.constant 0 : i32
    return %c0_i32, %c0_i32_0 : i32, i32
  }
  func.func @transform_4(%arg0: i32) -> (i32, i32) {
    %c0_i32 = arith.constant 0 : i32
    %c0_i32_0 = arith.constant 0 : i32
    %c0_i32_1 = arith.constant 0 : i32
    return %c0_i32, %c0_i32_0 : i32, i32
  }
  func.func @transform_5(%arg0: i32) -> (i32, i32) {
    %c0_i32 = arith.constant 0 : i32
    %c0_i32_0 = arith.constant 0 : i32
    %c0_i32_1 = arith.constant 0 : i32
    return %c0_i32, %c0_i32_0 : i32, i32
  }
  func.func @transform_6(%arg0: i32) -> (i32, i32) {
    %c0_i32 = arith.constant 0 : i32
    %c0_i32_0 = arith.constant 0 : i32
    %c0_i32_1 = arith.constant 0 : i32
    return %c0_i32, %c0_i32_0 : i32, i32
  }
  func.func @transform_7(%arg0: i32) -> (i32, i32) {
    %c0_i32 = arith.constant 0 : i32
    %c0_i32_0 = arith.constant 0 : i32
    %c0_i32_1 = arith.constant 0 : i32
    return %c0_i32, %c0_i32_0 : i32, i32
  }
  func.func @transform_8(%arg0: i32) -> (i32, i32, i32) {
    %c0_i32 = arith.constant 0 : i32
    %c0_i32_0 = arith.constant 0 : i32
    %c0_i32_1 = arith.constant 0 : i32
    return %arg0, %c0_i32, %c0_i32_0 : i32, i32, i32
  }
}

</mosaic_0001>

<llo_original>
// kernel: tpu_custom_call.1
$region0: #{tpu_custom_call.1}
  #allocation0 [shape = 'u32[]', space=smem, size = 0x4, offset = 0x4, fixed_abs, tag = 'smem constant byte address 0x4 - core index']
  #allocation1 [shape = 'u32[144,128]{1,0:T(1,128)}', space=vmem, size = 0x12000, scoped, tag = 'internal scratch']
  %s0 = inlined_call_operand.vmem [shape: f32[2,8,256], index: 0, kind: input, shape index: {}]
  %s1 = inlined_call_operand.vmem [shape: bf16[32,8], index: 1, kind: input, shape index: {}]
  %s2 = inlined_call_operand.vmem [shape: f32[32,9], index: 2, kind: input, shape index: {}]
  %s3 = inlined_call_operand.vmem [shape: bf16[8,32], index: 3, kind: input, shape index: {}]
  %s4 = inlined_call_operand.vmem [shape: f32[9,256], index: 4, kind: input, shape index: {}]
  %s5 = inlined_call_operand.vmem [shape: f32[32,1], index: 5, kind: input, shape index: {}]
  %s6 = inlined_call_operand.vmem [shape: f32[32,1], index: 6, kind: input, shape index: {}]
  %s7 = inlined_call_operand.vmem [shape: f32[8,1], index: 7, kind: input, shape index: {}]
  %s8 = inlined_call_operand.hbm [shape: f32[2,8,256], index: 8, kind: output, shape index: {}]
  %s9 = sld [smem:[#allocation0]]
  $region65: #{tpu_custom_call.1} parent=0
    _
  %s11 = ssub.s32 1, %s9
  %s12 = scalar_select 0, %s11, %s9
  $region1: #{tpu_custom_call.1} parent=0
    #allocation2 [shape = 'u8[16384]{0}', space=vmem, size = 0x4000, scoped, tag = 'output window, operand 0']
    #allocation3 [shape = 's32[2]{0}', space=sflag, size = 0x8, scoped, tag = 'scoped memory for tpu_custom_call.1']
    %13 = vsyncpa [#allocation3], 0
    %s14 = scalar_lea.sflag [#allocation3], 1
    %15 = vsyncpa %s14, 0
    loop: start=0, step=1, limit=4
    $region2: #{tpu_custom_call.1} parent=1 // loop_pre_header
      _
    $region3: #{tpu_custom_call.1} parent=1 // loop_header
      %s17 = sphi 0, %s21
      %p18 = scmp.ge.s32.totalorder %s17, 4
      %s27 = sphi 0, %s29
      %s30 = sphi 0, %s27
      %s31 = sphi 0, %s30
      %s47 = sphi 0, %s31
      %s51 = sphi 0, %s51
      %s53 = sphi 0, %s51
      %s54 = sphi 0, %s53
      %s68 = sphi 0, %s54
      %s72 = sphi 0, %s72
      %s74 = sphi 0, %s72
      %s75 = sphi 0, %s74
      %s89 = sphi 0, %s75
      %s93 = sphi 0, %s93
      %s95 = sphi 0, %s93
      %s96 = sphi 0, %s95
      %s110 = sphi 0, %s96
      %s114 = sphi 0, %s114
      %s116 = sphi 0, %s114
      %s117 = sphi 0, %s116
      %s131 = sphi 0, %s117
      %s135 = sphi 0, %s135
      %s137 = sphi 0, %s135
      %s138 = sphi 0, %s137
      %s152 = sphi 0, %s138
      %s156 = sphi 0, %s156
      %s158 = sphi 0, %s156
      %s159 = sphi 0, %s158
      %s173 = sphi 0, %s159
      %s177 = sphi 0, %s177
      %s179 = sphi 0, %s177
      %s180 = sphi 0, %s179
      %s194 = sphi 0, %s180
      %s200 = sphi 0, %s202
      %s203 = sphi 0, %s200
      %s204 = sphi 0, %s203
      %s220 = sphi 0, %s204
    $region4: #{tpu_custom_call.1} parent=1 // loop_header_branch
      %20 = sbr.rel (%p18) target = $region8
    $region5: #{tpu_custom_call.1} parent=1 // loop_body
      %s22 = ssub.s32 %s17, 1
      %s23 = ssub.s32 %s17, 2
      %s24 = sadd.s32 %s17, 1
      %s25 = ssub.s32 %s17, %s24
      %p26 = scmp.eq.s32.totalorder %s25, 0
      %s28 = sadd.s32 %s27, 1
      %s29 = scalar_select %p26, %s27, %s28
      %p32 = pneg %p26
      %p33 = scmp.eq.s32.totalorder %s17, 1
      %p34 = por %p32, %p33
      %p35 = scmp.ne.s32.totalorder %s27, %s30
      %p36 = scmp.eq.s32.totalorder %s17, 0
      %p37 = por %p35, %p36
      %p38 = scmp.ne.s32.totalorder %s27, %s30
      %p39 = scmp.eq.s32.totalorder %s22, 1
      %p40 = por %p38, %p39
      %p41 = scmp.ne.s32.totalorder %s30, %s31
      %p42 = scmp.eq.s32.totalorder %s22, 0
      %p43 = por %p41, %p42
      %p44 = scmp.ne.s32.totalorder %s30, %s31
      %p45 = scmp.eq.s32.totalorder %s23, 1
      %p46 = por %p44, %p45
      %p48 = scmp.ne.s32.totalorder %s31, %s47
      %p49 = scmp.eq.s32.totalorder %s23, 0
      %p50 = por %p48, %p49
      %s52 = sadd.s32 %s51, 1
      %p55 = scmp.eq.s32.totalorder %s17, 1
      %p56 = scmp.ne.s32.totalorder %s51, %s53
      %p57 = scmp.eq.s32.totalorder %s17, 0
      %p58 = por %p56, %p57
      %p59 = scmp.ne.s32.totalorder %s51, %s53
      %p60 = scmp.eq.s32.totalorder %s22, 1
      %p61 = por %p59, %p60
      %p62 = scmp.ne.s32.totalorder %s53, %s54
      %p63 = scmp.eq.s32.totalorder %s22, 0
      %p64 = por %p62, %p63
      %p65 = scmp.ne.s32.totalorder %s53, %s54
      %p66 = scmp.eq.s32.totalorder %s23, 1
      %p67 = por %p65, %p66
      %p69 = scmp.ne.s32.totalorder %s54, %s68
      %p70 = scmp.eq.s32.totalorder %s23, 0
      %p71 = por %p69, %p70
      %s73 = sadd.s32 %s72, 1
      %p76 = scmp.eq.s32.totalorder %s17, 1
      %p77 = scmp.ne.s32.totalorder %s72, %s74
      %p78 = scmp.eq.s32.totalorder %s17, 0
      %p79 = por %p77, %p78
      %p80 = scmp.ne.s32.totalorder %s72, %s74
      %p81 = scmp.eq.s32.totalorder %s22, 1
      %p82 = por %p80, %p81
      %p83 = scmp.ne.s32.totalorder %s74, %s75
      %p84 = scmp.eq.s32.totalorder %s22, 0
      %p85 = por %p83, %p84
      %p86 = scmp.ne.s32.totalorder %s74, %s75
      %p87 = scmp.eq.s32.totalorder %s23, 1
      %p88 = por %p86, %p87
      %p90 = scmp.ne.s32.totalorder %s75, %s89
      %p91 = scmp.eq.s32.totalorder %s23, 0
      %p92 = por %p90, %p91
      %s94 = sadd.s32 %s93, 1
      %p97 = scmp.eq.s32.totalorder %s17, 1
      %p98 = scmp.ne.s32.totalorder %s93, %s95
      %p99 = scmp.eq.s32.totalorder %s17, 0
      %p100 = por %p98, %p99
      %p101 = scmp.ne.s32.totalorder %s93, %s95
      %p102 = scmp.eq.s32.totalorder %s22, 1
      %p103 = por %p101, %p102
      %p104 = scmp.ne.s32.totalorder %s95, %s96
      %p105 = scmp.eq.s32.totalorder %s22, 0
      %p106 = por %p104, %p105
      %p107 = scmp.ne.s32.totalorder %s95, %s96
      %p108 = scmp.eq.s32.totalorder %s23, 1
      %p109 = por %p107, %p108
      %p111 = scmp.ne.s32.totalorder %s96, %s110
      %p112 = scmp.eq.s32.totalorder %s23, 0
      %p113 = por %p111, %p112
      %s115 = sadd.s32 %s114, 1
      %p118 = scmp.eq.s32.totalorder %s17, 1
      %p119 = scmp.ne.s32.totalorder %s114, %s116
      %p120 = scmp.eq.s32.totalorder %s17, 0
      %p121 = por %p119, %p120
      %p122 = scmp.ne.s32.totalorder %s114, %s116
      %p123 = scmp.eq.s32.totalorder %s22, 1
      %p124 = por %p122, %p123
      %p125 = scmp.ne.s32.totalorder %s116, %s117
      %p126 = scmp.eq.s32.totalorder %s22, 0
      %p127 = por %p125, %p126
      %p128 = scmp.ne.s32.totalorder %s116, %s117
      %p129 = scmp.eq.s32.totalorder %s23, 1
      %p130 = por %p128, %p129
      %p132 = scmp.ne.s32.totalorder %s117, %s131
      %p133 = scmp.eq.s32.totalorder %s23, 0
      %p134 = por %p132, %p133
      %s136 = sadd.s32 %s135, 1
      %p139 = scmp.eq.s32.totalorder %s17, 1
      %p140 = scmp.ne.s32.totalorder %s135, %s137
      %p141 = scmp.eq.s32.totalorder %s17, 0
      %p142 = por %p140, %p141
      %p143 = scmp.ne.s32.totalorder %s135, %s137
      %p144 = scmp.eq.s32.totalorder %s22, 1
      %p145 = por %p143, %p144
      %p146 = scmp.ne.s32.totalorder %s137, %s138
      %p147 = scmp.eq.s32.totalorder %s22, 0
      %p148 = por %p146, %p147
      %p149 = scmp.ne.s32.totalorder %s137, %s138
      %p150 = scmp.eq.s32.totalorder %s23, 1
      %p151 = por %p149, %p150
      %p153 = scmp.ne.s32.totalorder %s138, %s152
      %p154 = scmp.eq.s32.totalorder %s23, 0
      %p155 = por %p153, %p154
      %s157 = sadd.s32 %s156, 1
      %p160 = scmp.eq.s32.totalorder %s17, 1
      %p161 = scmp.ne.s32.totalorder %s156, %s158
      %p162 = scmp.eq.s32.totalorder %s17, 0
      %p163 = por %p161, %p162
      %p164 = scmp.ne.s32.totalorder %s156, %s158
      %p165 = scmp.eq.s32.totalorder %s22, 1
      %p166 = por %p164, %p165
      %p167 = scmp.ne.s32.totalorder %s158, %s159
      %p168 = scmp.eq.s32.totalorder %s22, 0
      %p169 = por %p167, %p168
      %p170 = scmp.ne.s32.totalorder %s158, %s159
      %p171 = scmp.eq.s32.totalorder %s23, 1
      %p172 = por %p170, %p171
      %p174 = scmp.ne.s32.totalorder %s159, %s173
      %p175 = scmp.eq.s32.totalorder %s23, 0
      %p176 = por %p174, %p175
      %s178 = sadd.s32 %s177, 1
      %p181 = scmp.eq.s32.totalorder %s17, 1
      %p182 = scmp.ne.s32.totalorder %s177, %s179
      %p183 = scmp.eq.s32.totalorder %s17, 0
      %p184 = por %p182, %p183
      %p185 = scmp.ne.s32.totalorder %s177, %s179
      %p186 = scmp.eq.s32.totalorder %s22, 1
      %p187 = por %p185, %p186
      %p188 = scmp.ne.s32.totalorder %s179, %s180
      %p189 = scmp.eq.s32.totalorder %s22, 0
      %p190 = por %p188, %p189
      %p191 = scmp.ne.s32.totalorder %s179, %s180
      %p192 = scmp.eq.s32.totalorder %s23, 1
      %p193 = por %p191, %p192
      %p195 = scmp.ne.s32.totalorder %s180, %s194
      %p196 = scmp.eq.s32.totalorder %s23, 0
      %p197 = por %p195, %p196
      %s198 = ssub.s32 %s17, %s24
      %p199 = scmp.eq.s32.totalorder %s198, 0
      %s201 = sadd.s32 %s200, 1
      %s202 = scalar_select %p199, %s200, %s201
      %p205 = pneg %p199
      %p206 = scmp.eq.s32.totalorder %s17, 1
      %p207 = por %p205, %p206
      %p208 = scmp.ne.s32.totalorder %s200, %s203
      %p209 = scmp.eq.s32.totalorder %s17, 0
      %p210 = por %p208, %p209
      %p211 = scmp.ne.s32.totalorder %s200, %s203
      %p212 = scmp.eq.s32.totalorder %s22, 1
      %p213 = por %p211, %p212
      %p214 = scmp.ne.s32.totalorder %s203, %s204
      %p215 = scmp.eq.s32.totalorder %s22, 0
      %p216 = por %p214, %p215
      %p217 = scmp.ne.s32.totalorder %s203, %s204
      %p218 = scmp.eq.s32.totalorder %s23, 1
      %p219 = por %p217, %p218
      %p221 = scmp.ne.s32.totalorder %s204, %s220
      %p222 = scmp.eq.s32.totalorder %s23, 0
      %p223 = por %p221, %p222
      %p224 = scmp.le.s32.totalorder 1, %s17
      %p225 = scmp.lt.s32.totalorder %s17, 3
      %p226 = pnand %p224, %p225
      %p227 = pneg %p226
      // Predicated region
      $region9: #{tpu_custom_call.1} parent=5 // pred_check
        _
      $region10: #{tpu_custom_call.1} parent=5 // pred_check_branch
        %229 = sbr.rel (%p226) target = $region12
      $region11: #{tpu_custom_call.1} parent=5 // pred_region
        %s230 = ssub.s32 %s17, 1
        // Predicated region
        $region13: #{tpu_custom_call.1} parent=11 // pred_check
          %p231 = pneg %p64
        $region14: #{tpu_custom_call.1} parent=11 // pred_check_branch
          %233 = sbr.rel (%p231) target = $region16
        $region15: #{tpu_custom_call.1} parent=11 // pred_region
          _
        $region16: #{tpu_custom_call.1} parent=11 // pred_fallthru
          _
        // Predicated region
        $region17: #{tpu_custom_call.1} parent=11 // pred_check
          %p234 = pneg %p85
        $region18: #{tpu_custom_call.1} parent=11 // pred_check_branch
          %236 = sbr.rel (%p234) target = $region20
        $region19: #{tpu_custom_call.1} parent=11 // pred_region
          _
        $region20: #{tpu_custom_call.1} parent=11 // pred_fallthru
          _
        // Predicated region
        $region21: #{tpu_custom_call.1} parent=11 // pred_check
          %p237 = pneg %p106
        $region22: #{tpu_custom_call.1} parent=11 // pred_check_branch
          %239 = sbr.rel (%p237) target = $region24
        $region23: #{tpu_custom_call.1} parent=11 // pred_region
          _
        $region24: #{tpu_custom_call.1} parent=11 // pred_fallthru
          _
        // Predicated region
        $region25: #{tpu_custom_call.1} parent=11 // pred_check
          %p240 = pneg %p127
        $region26: #{tpu_custom_call.1} parent=11 // pred_check_branch
          %242 = sbr.rel (%p240) target = $region28
        $region27: #{tpu_custom_call.1} parent=11 // pred_region
          _
        $region28: #{tpu_custom_call.1} parent=11 // pred_fallthru
          _
        // Predicated region
        $region29: #{tpu_custom_call.1} parent=11 // pred_check
          %p243 = pneg %p148
        $region30: #{tpu_custom_call.1} parent=11 // pred_check_branch
          %245 = sbr.rel (%p243) target = $region32
        $region31: #{tpu_custom_call.1} parent=11 // pred_region
          _
        $region32: #{tpu_custom_call.1} parent=11 // pred_fallthru
          _
        // Predicated region
        $region33: #{tpu_custom_call.1} parent=11 // pred_check
          %p246 = pneg %p169
        $region34: #{tpu_custom_call.1} parent=11 // pred_check_branch
          %248 = sbr.rel (%p246) target = $region36
        $region35: #{tpu_custom_call.1} parent=11 // pred_region
          _
        $region36: #{tpu_custom_call.1} parent=11 // pred_fallthru
          _
        // Predicated region
        $region37: #{tpu_custom_call.1} parent=11 // pred_check
          %p249 = pneg %p190
        $region38: #{tpu_custom_call.1} parent=11 // pred_check_branch
          %251 = sbr.rel (%p249) target = $region40
        $region39: #{tpu_custom_call.1} parent=11 // pred_region
          _
        $region40: #{tpu_custom_call.1} parent=11 // pred_fallthru
          _
      $region12: #{tpu_custom_call.1} parent=5 // pred_fallthru
        _
      %p252 = scmp.lt.s32.totalorder %s17, 2
      // Predicated region
      $region41: #{tpu_custom_call.1} parent=5 // pred_check
        %p253 = pneg %p252
      $region42: #{tpu_custom_call.1} parent=5 // pred_check_branch
        %255 = sbr.rel (%p253) target = $region44
      $region43: #{tpu_custom_call.1} parent=5 // pred_region
        // Predicated region
        $region45: #{tpu_custom_call.1} parent=43 // pred_check
          %p256 = pneg %p37
        $region46: #{tpu_custom_call.1} parent=43 // pred_check_branch
          %258 = sbr.rel (%p256) target = $region48
        $region47: #{tpu_custom_call.1} parent=43 // pred_region
          %p259 = scmp.lt.s32.totalorder %s17, 1
          %s260 = scalar_select %p259, %s17, 1
          %s261 = smul.addr %s260, 2
          %s262 = smul.addr %s261, 8
          %s263 = scalar_lea.vmem %s0, %s262
        $region48: #{tpu_custom_call.1} parent=43 // pred_fallthru
          _
      $region44: #{tpu_custom_call.1} parent=5 // pred_fallthru
        _
      %p264 = scmp.le.s32.totalorder 1, %s17
      %p265 = scmp.lt.s32.totalorder %s17, 3
      %p266 = pnand %p264, %p265
      %p267 = pneg %p266
      // Predicated region
      $region49: #{tpu_custom_call.1} parent=5 // pred_check
        _
      $region50: #{tpu_custom_call.1} parent=5 // pred_check_branch
        %269 = sbr.rel (%p266) target = $region52
      $region51: #{tpu_custom_call.1} parent=5 // pred_region
        %s270 = ssub.s32 %s17, 1
        %p271 = scmp.lt.s32.totalorder %s22, 1
        %s272 = scalar_select %p271, %s22, 1
        %s273 = smul.addr %s272, 2
        %s274 = smul.addr %s273, 8
        %s275 = scalar_lea.vmem %s0, %s274
        %p276 = pneg %p43
        %p277 = pneg %p40
        %p278 = pneg %p64
        %p279 = pneg %p61
        %p280 = pneg %p85
        %p281 = pneg %p82
        %p282 = pneg %p106
        %p283 = pneg %p103
        %p284 = pneg %p127
        %p285 = pneg %p124
        %p286 = pneg %p148
        %p287 = pneg %p145
        %p288 = pneg %p169
        %p289 = pneg %p166
        %p290 = pneg %p190
        %p291 = pneg %p187
        %p292 = pneg %p216
        %p293 = pneg %p213
        %s294 = sand.u32 %s203, 1
        %s295 = scalar_lea.sflag [#allocation3], %s294
        %s296 = sand.u32 %s203, 1
        %s297 = smul.addr %s296, 16
        %s298 = scalar_lea.vmem [#allocation2], %s297
        %p299 = scmp.lt.s32.totalorder %s22, 1
        %s300 = scalar_select %p299, %s22, 1
        %s301 = smul.addr %s300, 2
        %s302 = smul.addr %s301, 8
        %s303 = scalar_lea.vmem %s0, %s302
        %v305 = vld [vmem:[%s303] sm:$0xff]
        %v306 = vld [vmem:[%s303 + $0x8] sm:$0xff]
        %v307 = vld [vmem:[%s1] sm:$0xf]
        %v308 = vld [vmem:[%s1 + $0x4] sm:$0xf]
        %v309 = vld [vmem:[%s1 + $0x8] sm:$0xf]
        %v310 = vld [vmem:[%s1 + $0xc] sm:$0xf]
        %v311 = vpack.c.bf16 %v305, %v305
        %v312 = vpack.c.bf16 %v306, %v306
        %v313 = vld [vmem:[%s5] sm:$0xff]
        %v314 = vld [vmem:[%s5 + $0x8] sm:$0xff]
        %v315 = vld [vmem:[%s5 + $0x10] sm:$0xff]
        %v316 = vld [vmem:[%s5 + $0x18] sm:$0xff]
        %318 = vset.pattern.permute.xlu0 0
        %319 = vperm.xlu0 %318, %v313
        %v320 = vpop.permute.xlu0 %319
        %323 = vset.pattern.permute.xlu0 0
        %324 = vperm.xlu0 %323, %v314
        %v325 = vpop.permute.xlu0 %324
        %328 = vset.pattern.permute.xlu0 0
        %329 = vperm.xlu0 %328, %v315
        %v330 = vpop.permute.xlu0 %329
        %333 = vset.pattern.permute.xlu0 0
        %334 = vperm.xlu0 %333, %v316
        %v335 = vpop.permute.xlu0 %334
        %v341 = vunpack.c.l.b16 %v307
        %v342 = vunpack.c.l.b16 %v308
        %v343 = vunpack.c.l.b16 %v309
        %v344 = vunpack.c.l.b16 %v310
        %v345 = vpack.c.b16 %v342, %v341
        %v346 = vpack.c.b16 %v344, %v343
        %vm347 = vcmask 64512
        %v349 = vsel %vm347, %v345, 0
        %v352 = vsel %vm347, %v346, 0
        %vm354 = vcmask 1043456
        %v356 = vsel %vm354, %v311, 0
        %v359 = vsel %vm354, %v312, 0
        %361 = vmatprep.subr.bf16.mxu0 0
        %362 = vmatpush1.bf16.msra.mxu0 0
        %363 = vmatprep.subr.bf16.mxu0 0
        %364 = vmatpush1.bf16.msra.mxu0 0
        %365 = vmatprep.subr.bf16.mxu0 0
        %366 = vmatpush1.bf16.msra.mxu0 0
        %367 = vmatprep.subr.bf16.mxu0 0
        %368 = vmatpush1.bf16.msra.mxu0 0
        %369 = vmatprep.subr.bf16.mxu0 0
        %370 = vmatpush1.bf16.msra.mxu0 0
        %371 = vmatprep.subr.bf16.mxu0 0
        %372 = vmatpush1.bf16.msra.mxu0 0
        %373 = vmatprep.subr.bf16.mxu0 0
        %374 = vmatpush1.bf16.msra.mxu0 0
        %375 = vmatprep.subr.bf16.mxu0 %v359
        %376 = vmatpush1.bf16.msra.mxu0 %v356
        %377 = vmatprep.subr.bf16.mxu0 0
        %378 = vmatpush2.bf16.msra.mxu0 0
        %379 = vmatprep.subr.bf16.mxu0 0
        %380 = vmatpush2.bf16.msra.mxu0 0
        %381 = vmatprep.subr.bf16.mxu0 0
        %382 = vmatpush2.bf16.msra.mxu0 0
        %383 = vmatprep.subr.bf16.mxu0 0
        %384 = vmatpush2.bf16.msra.mxu0 0
        %385 = vmatprep.subr.bf16.mxu0 0
        %386 = vmatpush2.bf16.msra.mxu0 0
        %387 = vmatprep.subr.bf16.mxu0 0
        %388 = vmatpush2.bf16.msra.mxu0 0
        %389 = vmatprep.subr.bf16.mxu0 0
        %390 = vmatpush2.bf16.msra.mxu0 0
        %391 = vmatprep.subr.bf16.mxu0 0
        %392 = vmatpush2.bf16.msra.mxu0 0
        %393 = vmatprep.mubr.bf16.mxu0 0
        %394 = vmatmul.mubr.bf16.gmra.mxu0 %v349
        %v395 = vpop.f32.mrf.mxu0
        %v396 = vadd.f32 %v320, %v395
        %v397 = vpop.f32.mrf.mxu0
        %v398 = vadd.f32 %v320, %v397
        %v399 = vpop.f32.mrf.mxu0
        %v400 = vadd.f32 %v325, %v399
        %v401 = vpop.f32.mrf.mxu0
        %v402 = vadd.f32 %v325, %v401
        %403 = vmatprep.mubr.bf16.mxu0 0
        %404 = vmatmul.mubr.bf16.gmra.mxu0 %v352
        %v405 = vpop.f32.mrf.mxu0
        %v406 = vadd.f32 %v330, %v405
        %v407 = vpop.f32.mrf.mxu0
        %v408 = vadd.f32 %v330, %v407
        %v409 = vpop.f32.mrf.mxu0
        %v410 = vadd.f32 %v335, %v409
        %v411 = vpop.f32.mrf.mxu0
        %v412 = vadd.f32 %v335, %v411
        %413 = vdwg.mxu0
        %v414 = vmax.f32 %v396, 0.0
        %v415 = vmax.f32 %v398, 0.0
        %v416 = vmax.f32 %v400, 0.0
        %v417 = vmax.f32 %v402, 0.0
        %v418 = vmax.f32 %v406, 0.0
        %v419 = vmax.f32 %v408, 0.0
        %v420 = vmax.f32 %v410, 0.0
        %v421 = vmax.f32 %v412, 0.0
        %v422 = vld [vmem:[%s2] sm:$0xff]
        %v423 = vld [vmem:[%s2 + $0x8] sm:$0xff]
        %v424 = vld [vmem:[%s2 + $0x10] sm:$0xff]
        %v425 = vld [vmem:[%s2 + $0x18] sm:$0xff]
        %v426 = vld [vmem:[%s4] sm:$0xff]
        %v427 = vld [vmem:[%s4 + $0x8] sm:$0xff]
        %v428 = vld [vmem:[%s4 + $0x10] sm:$0x1]
        %v429 = vld [vmem:[%s4 + $0x18] sm:$0x1]
        %430 = vrot.lane.b32.xlu0 %v414, 17
        %v431 = vpop.permute.xlu0 %430
        %432 = vrot.lane.b32.xlu0 %v416, 17
        %v433 = vpop.permute.xlu0 %432
        %434 = vrot.lane.b32.xlu0 %v418, 17
        %v435 = vpop.permute.xlu0 %434
        %436 = vrot.lane.b32.xlu0 %v420, 17
        %v437 = vpop.permute.xlu0 %436
        %438 = vrot.lane.b32.xlu0 %v415, 17
        %v439 = vpop.permute.xlu0 %438
        %440 = vrot.lane.b32.xlu0 %v417, 17
        %v441 = vpop.permute.xlu0 %440
        %442 = vrot.lane.b32.xlu0 %v419, 17
        %v443 = vpop.permute.xlu0 %442
        %444 = vrot.lane.b32.xlu0 %v421, 17
        %v445 = vpop.permute.xlu0 %444
        %v446 = vlaneseq
        %v447 = vand.u32 %v446, 127
        %vm448 = vcmp.lt.s32.totalorder %v447, 17
        %v449 = vsel %vm448, %v431, %v439
        %v450 = vsel %vm448, %v433, %v441
        %v451 = vsel %vm448, %v435, %v443
        %v452 = vsel %vm448, %v437, %v445
        %v453 = vsel %vm448, %v439, %v431
        %v454 = vsel %vm448, %v441, %v433
        %v455 = vsel %vm448, %v443, %v435
        %v456 = vsel %vm448, %v445, %v437
        %458 = vset.pattern.permute.xlu0 0
        %459 = vperm.xlu0 %458, %v422
        %v460 = vpop.permute.xlu0 %459
        %463 = vset.pattern.permute.xlu0 0
        %464 = vperm.xlu0 %463, %v423
        %v465 = vpop.permute.xlu0 %464
        %468 = vset.pattern.permute.xlu0 0
        %469 = vperm.xlu0 %468, %v424
        %v470 = vpop.permute.xlu0 %469
        %473 = vset.pattern.permute.xlu0 0
        %474 = vperm.xlu0 %473, %v425
        %v475 = vpop.permute.xlu0 %474
        %v477 = vmul.f32 %v453, %v460
        %v478 = vmul.f32 %v449, %v460
        %v479 = vmul.f32 %v454, %v465
        %v480 = vmul.f32 %v450, %v465
        %v481 = vmul.f32 %v455, %v470
        %v482 = vmul.f32 %v451, %v470
        %v483 = vmul.f32 %v456, %v475
        %v484 = vmul.f32 %v452, %v475
        %v485 = vlaneseq
        %v486 = vshrl.u32 %v485, 7
        %v487 = vsub.s32 0, %v486
        %v488 = vrot.slane %v426, %v487
        %v489 = vlaneseq
        %v490 = vshrl.u32 %v489, 7
        %v491 = vsub.s32 0, %v490
        %v492 = vrot.slane %v427, %v491
        %v493 = vmul.f32 %v477, %v488
        %v494 = vmul.f32 %v478, %v492
        %v495 = vmul.f32 %v479, %v488
        %v496 = vmul.f32 %v480, %v492
        %v497 = vmul.f32 %v481, %v488
        %v498 = vmul.f32 %v482, %v492
        %v499 = vmul.f32 %v483, %v488
        %v500 = vmul.f32 %v484, %v492
        %501 = vrot.lane.b32.xlu0 %v414, 16
        %v502 = vpop.permute.xlu0 %501
        %503 = vrot.lane.b32.xlu0 %v416, 16
        %v504 = vpop.permute.xlu0 %503
        %505 = vrot.lane.b32.xlu0 %v418, 16
        %v506 = vpop.permute.xlu0 %505
        %507 = vrot.lane.b32.xlu0 %v420, 16
        %v508 = vpop.permute.xlu0 %507
        %509 = vrot.lane.b32.xlu0 %v415, 16
        %v510 = vpop.permute.xlu0 %509
        %511 = vrot.lane.b32.xlu0 %v417, 16
        %v512 = vpop.permute.xlu0 %511
        %513 = vrot.lane.b32.xlu0 %v419, 16
        %v514 = vpop.permute.xlu0 %513
        %515 = vrot.lane.b32.xlu0 %v421, 16
        %v516 = vpop.permute.xlu0 %515
        %vm517 = vcmp.lt.s32.totalorder %v447, 16
        %v518 = vsel %vm517, %v502, %v510
        %v519 = vsel %vm517, %v504, %v512
        %v520 = vsel %vm517, %v506, %v514
        %v521 = vsel %vm517, %v508, %v516
        %v522 = vsel %vm517, %v510, %v502
        %v523 = vsel %vm517, %v512, %v504
        %v524 = vsel %vm517, %v514, %v506
        %v525 = vsel %vm517, %v516, %v508
        %526 = vset.pattern.permute.xlu0 1
        %527 = vperm.xlu0 %526, %v422
        %v528 = vpop.permute.xlu0 %527
        %530 = vset.pattern.permute.xlu0 1
        %531 = vperm.xlu0 %530, %v423
        %v532 = vpop.permute.xlu0 %531
        %534 = vset.pattern.permute.xlu0 1
        %535 = vperm.xlu0 %534, %v424
        %v536 = vpop.permute.xlu0 %535
        %538 = vset.pattern.permute.xlu0 1
        %539 = vperm.xlu0 %538, %v425
        %v540 = vpop.permute.xlu0 %539
        %v542 = vmul.f32 %v522, %v528
        %v543 = vmul.f32 %v518, %v528
        %v544 = vmul.f32 %v523, %v532
        %v545 = vmul.f32 %v519, %v532
        %v546 = vmul.f32 %v524, %v536
        %v547 = vmul.f32 %v520, %v536
        %v548 = vmul.f32 %v525, %v540
        %v549 = vmul.f32 %v521, %v540
        %v550 = vlaneseq
        %v551 = vshrl.u32 %v550, 7
        %v552 = vsub.s32 1, %v551
        %v553 = vrot.slane %v426, %v552
        %v554 = vlaneseq
        %v555 = vshrl.u32 %v554, 7
        %v556 = vsub.s32 1, %v555
        %v557 = vrot.slane %v427, %v556
        %v558 = vmul.f32 %v542, %v553
        %v559 = vmul.f32 %v543, %v557
        %v560 = vmul.f32 %v544, %v553
        %v561 = vmul.f32 %v545, %v557
        %v562 = vmul.f32 %v546, %v553
        %v563 = vmul.f32 %v547, %v557
        %v564 = vmul.f32 %v548, %v553
        %v565 = vmul.f32 %v549, %v557
        %v566 = vadd.f32 %v493, %v558
        %v567 = vadd.f32 %v494, %v559
        %v568 = vadd.f32 %v495, %v560
        %v569 = vadd.f32 %v496, %v561
        %v570 = vadd.f32 %v497, %v562
        %v571 = vadd.f32 %v498, %v563
        %v572 = vadd.f32 %v499, %v564
        %v573 = vadd.f32 %v500, %v565
        %574 = vrot.lane.b32.xlu0 %v414, 15
        %v575 = vpop.permute.xlu0 %574
        %576 = vrot.lane.b32.xlu0 %v416, 15
        %v577 = vpop.permute.xlu0 %576
        %578 = vrot.lane.b32.xlu0 %v418, 15
        %v579 = vpop.permute.xlu0 %578
        %580 = vrot.lane.b32.xlu0 %v420, 15
        %v581 = vpop.permute.xlu0 %580
        %582 = vrot.lane.b32.xlu0 %v415, 15
        %v583 = vpop.permute.xlu0 %582
        %584 = vrot.lane.b32.xlu0 %v417, 15
        %v585 = vpop.permute.xlu0 %584
        %586 = vrot.lane.b32.xlu0 %v419, 15
        %v587 = vpop.permute.xlu0 %586
        %588 = vrot.lane.b32.xlu0 %v421, 15
        %v589 = vpop.permute.xlu0 %588
        %vm590 = vcmp.lt.s32.totalorder %v447, 15
        %v591 = vsel %vm590, %v575, %v583
        %v592 = vsel %vm590, %v577, %v585
        %v593 = vsel %vm590, %v579, %v587
        %v594 = vsel %vm590, %v581, %v589
        %v595 = vsel %vm590, %v583, %v575
        %v596 = vsel %vm590, %v585, %v577
        %v597 = vsel %vm590, %v587, %v579
        %v598 = vsel %vm590, %v589, %v581
        %599 = vset.pattern.permute.xlu0 2
        %600 = vperm.xlu0 %599, %v422
        %v601 = vpop.permute.xlu0 %600
        %603 = vset.pattern.permute.xlu0 2
        %604 = vperm.xlu0 %603, %v423
        %v605 = vpop.permute.xlu0 %604
        %607 = vset.pattern.permute.xlu0 2
        %608 = vperm.xlu0 %607, %v424
        %v609 = vpop.permute.xlu0 %608
        %611 = vset.pattern.permute.xlu0 2
        %612 = vperm.xlu0 %611, %v425
        %v613 = vpop.permute.xlu0 %612
        %v615 = vmul.f32 %v595, %v601
        %v616 = vmul.f32 %v591, %v601
        %v617 = vmul.f32 %v596, %v605
        %v618 = vmul.f32 %v592, %v605
        %v619 = vmul.f32 %v597, %v609
        %v620 = vmul.f32 %v593, %v609
        %v621 = vmul.f32 %v598, %v613
        %v622 = vmul.f32 %v594, %v613
        %v623 = vlaneseq
        %v624 = vshrl.u32 %v623, 7
        %v625 = vsub.s32 2, %v624
        %v626 = vrot.slane %v426, %v625
        %v627 = vlaneseq
        %v628 = vshrl.u32 %v627, 7
        %v629 = vsub.s32 2, %v628
        %v630 = vrot.slane %v427, %v629
        %v631 = vmul.f32 %v615, %v626
        %v632 = vmul.f32 %v616, %v630
        %v633 = vmul.f32 %v617, %v626
        %v634 = vmul.f32 %v618, %v630
        %v635 = vmul.f32 %v619, %v626
        %v636 = vmul.f32 %v620, %v630
        %v637 = vmul.f32 %v621, %v626
        %v638 = vmul.f32 %v622, %v630
        %v639 = vadd.f32 %v566, %v631
        %v640 = vadd.f32 %v567, %v632
        %v641 = vadd.f32 %v568, %v633
        %v642 = vadd.f32 %v569, %v634
        %v643 = vadd.f32 %v570, %v635
        %v644 = vadd.f32 %v571, %v636
        %v645 = vadd.f32 %v572, %v637
        %v646 = vadd.f32 %v573, %v638
        %647 = vrot.lane.b32.xlu0 %v414, 1
        %v648 = vpop.permute.xlu0 %647
        %649 = vrot.lane.b32.xlu0 %v416, 1
        %v650 = vpop.permute.xlu0 %649
        %651 = vrot.lane.b32.xlu0 %v418, 1
        %v652 = vpop.permute.xlu0 %651
        %653 = vrot.lane.b32.xlu0 %v420, 1
        %v654 = vpop.permute.xlu0 %653
        %655 = vrot.lane.b32.xlu0 %v415, 1
        %v656 = vpop.permute.xlu0 %655
        %657 = vrot.lane.b32.xlu0 %v417, 1
        %v658 = vpop.permute.xlu0 %657
        %659 = vrot.lane.b32.xlu0 %v419, 1
        %v660 = vpop.permute.xlu0 %659
        %661 = vrot.lane.b32.xlu0 %v421, 1
        %v662 = vpop.permute.xlu0 %661
        %vm663 = vcmp.lt.s32.totalorder %v447, 1
        %v664 = vsel %vm663, %v648, %v656
        %v665 = vsel %vm663, %v650, %v658
        %v666 = vsel %vm663, %v652, %v660
        %v667 = vsel %vm663, %v654, %v662
        %v668 = vsel %vm663, %v656, %v648
        %v669 = vsel %vm663, %v658, %v650
        %v670 = vsel %vm663, %v660, %v652
        %v671 = vsel %vm663, %v662, %v654
        %672 = vset.pattern.permute.xlu0 3
        %673 = vperm.xlu0 %672, %v422
        %v674 = vpop.permute.xlu0 %673
        %676 = vset.pattern.permute.xlu0 3
        %677 = vperm.xlu0 %676, %v423
        %v678 = vpop.permute.xlu0 %677
        %680 = vset.pattern.permute.xlu0 3
        %681 = vperm.xlu0 %680, %v424
        %v682 = vpop.permute.xlu0 %681
        %684 = vset.pattern.permute.xlu0 3
        %685 = vperm.xlu0 %684, %v425
        %v686 = vpop.permute.xlu0 %685
        %v688 = vmul.f32 %v668, %v674
        %v689 = vmul.f32 %v664, %v674
        %v690 = vmul.f32 %v669, %v678
        %v691 = vmul.f32 %v665, %v678
        %v692 = vmul.f32 %v670, %v682
        %v693 = vmul.f32 %v666, %v682
        %v694 = vmul.f32 %v671, %v686
        %v695 = vmul.f32 %v667, %v686
        %v696 = vlaneseq
        %v697 = vshrl.u32 %v696, 7
        %v698 = vsub.s32 3, %v697
        %v699 = vrot.slane %v426, %v698
        %v700 = vlaneseq
        %v701 = vshrl.u32 %v700, 7
        %v702 = vsub.s32 3, %v701
        %v703 = vrot.slane %v427, %v702
        %v704 = vmul.f32 %v688, %v699
        %v705 = vmul.f32 %v689, %v703
        %v706 = vmul.f32 %v690, %v699
        %v707 = vmul.f32 %v691, %v703
        %v708 = vmul.f32 %v692, %v699
        %v709 = vmul.f32 %v693, %v703
        %v710 = vmul.f32 %v694, %v699
        %v711 = vmul.f32 %v695, %v703
        %v712 = vadd.f32 %v639, %v704
        %v713 = vadd.f32 %v640, %v705
        %v714 = vadd.f32 %v641, %v706
        %v715 = vadd.f32 %v642, %v707
        %v716 = vadd.f32 %v643, %v708
        %v717 = vadd.f32 %v644, %v709
        %v718 = vadd.f32 %v645, %v710
        %v719 = vadd.f32 %v646, %v711
        %720 = vset.pattern.permute.xlu0 4
        %721 = vperm.xlu0 %720, %v422
        %v722 = vpop.permute.xlu0 %721
        %724 = vset.pattern.permute.xlu0 4
        %725 = vperm.xlu0 %724, %v423
        %v726 = vpop.permute.xlu0 %725
        %728 = vset.pattern.permute.xlu0 4
        %729 = vperm.xlu0 %728, %v424
        %v730 = vpop.permute.xlu0 %729
        %732 = vset.pattern.permute.xlu0 4
        %733 = vperm.xlu0 %732, %v425
        %v734 = vpop.permute.xlu0 %733
        %v736 = vmul.f32 %v414, %v722
        %v737 = vmul.f32 %v415, %v722
        %v738 = vmul.f32 %v416, %v726
        %v739 = vmul.f32 %v417, %v726
        %v740 = vmul.f32 %v418, %v730
        %v741 = vmul.f32 %v419, %v730
        %v742 = vmul.f32 %v420, %v734
        %v743 = vmul.f32 %v421, %v734
        %v744 = vadd.f32 %v712, %v736
        %v745 = vadd.f32 %v713, %v737
        %v746 = vadd.f32 %v714, %v738
        %v747 = vadd.f32 %v715, %v739
        %v748 = vadd.f32 %v716, %v740
        %v749 = vadd.f32 %v717, %v741
        %v750 = vadd.f32 %v718, %v742
        %v751 = vadd.f32 %v719, %v743
        %752 = vrot.lane.b32.xlu0 %v414, 127
        %v753 = vpop.permute.xlu0 %752
        %754 = vrot.lane.b32.xlu0 %v416, 127
        %v755 = vpop.permute.xlu0 %754
        %756 = vrot.lane.b32.xlu0 %v418, 127
        %v757 = vpop.permute.xlu0 %756
        %758 = vrot.lane.b32.xlu0 %v420, 127
        %v759 = vpop.permute.xlu0 %758
        %760 = vrot.lane.b32.xlu0 %v415, 127
        %v761 = vpop.permute.xlu0 %760
        %762 = vrot.lane.b32.xlu0 %v417, 127
        %v763 = vpop.permute.xlu0 %762
        %764 = vrot.lane.b32.xlu0 %v419, 127
        %v765 = vpop.permute.xlu0 %764
        %766 = vrot.lane.b32.xlu0 %v421, 127
        %v767 = vpop.permute.xlu0 %766
        %vm768 = vcmp.lt.s32.totalorder %v447, 127
        %v769 = vsel %vm768, %v753, %v761
        %v770 = vsel %vm768, %v755, %v763
        %v771 = vsel %vm768, %v757, %v765
        %v772 = vsel %vm768, %v759, %v767
        %v773 = vsel %vm768, %v761, %v753
        %v774 = vsel %vm768, %v763, %v755
        %v775 = vsel %vm768, %v765, %v757
        %v776 = vsel %vm768, %v767, %v759
        %777 = vset.pattern.permute.xlu0 5
        %778 = vperm.xlu0 %777, %v422
        %v779 = vpop.permute.xlu0 %778
        %781 = vset.pattern.permute.xlu0 5
        %782 = vperm.xlu0 %781, %v423
        %v783 = vpop.permute.xlu0 %782
        %785 = vset.pattern.permute.xlu0 5
        %786 = vperm.xlu0 %785, %v424
        %v787 = vpop.permute.xlu0 %786
        %789 = vset.pattern.permute.xlu0 5
        %790 = vperm.xlu0 %789, %v425
        %v791 = vpop.permute.xlu0 %790
        %v793 = vmul.f32 %v769, %v779
        %v794 = vmul.f32 %v773, %v779
        %v795 = vmul.f32 %v770, %v783
        %v796 = vmul.f32 %v774, %v783
        %v797 = vmul.f32 %v771, %v787
        %v798 = vmul.f32 %v775, %v787
        %v799 = vmul.f32 %v772, %v791
        %v800 = vmul.f32 %v776, %v791
        %v801 = vlaneseq
        %v802 = vshrl.u32 %v801, 7
        %v803 = vsub.s32 5, %v802
        %v804 = vrot.slane %v426, %v803
        %v805 = vlaneseq
        %v806 = vshrl.u32 %v805, 7
        %v807 = vsub.s32 5, %v806
        %v808 = vrot.slane %v427, %v807
        %v809 = vmul.f32 %v793, %v804
        %v810 = vmul.f32 %v794, %v808
        %v811 = vmul.f32 %v795, %v804
        %v812 = vmul.f32 %v796, %v808
        %v813 = vmul.f32 %v797, %v804
        %v814 = vmul.f32 %v798, %v808
        %v815 = vmul.f32 %v799, %v804
        %v816 = vmul.f32 %v800, %v808
        %v817 = vadd.f32 %v744, %v809
        %v818 = vadd.f32 %v745, %v810
        %v819 = vadd.f32 %v746, %v811
        %v820 = vadd.f32 %v747, %v812
        %v821 = vadd.f32 %v748, %v813
        %v822 = vadd.f32 %v749, %v814
        %v823 = vadd.f32 %v750, %v815
        %v824 = vadd.f32 %v751, %v816
        %825 = vrot.lane.b32.xlu0 %v414, 113
        %v826 = vpop.permute.xlu0 %825
        %827 = vrot.lane.b32.xlu0 %v416, 113
        %v828 = vpop.permute.xlu0 %827
        %829 = vrot.lane.b32.xlu0 %v418, 113
        %v830 = vpop.permute.xlu0 %829
        %831 = vrot.lane.b32.xlu0 %v420, 113
        %v832 = vpop.permute.xlu0 %831
        %833 = vrot.lane.b32.xlu0 %v415, 113
        %v834 = vpop.permute.xlu0 %833
        %835 = vrot.lane.b32.xlu0 %v417, 113
        %v836 = vpop.permute.xlu0 %835
        %837 = vrot.lane.b32.xlu0 %v419, 113
        %v838 = vpop.permute.xlu0 %837
        %839 = vrot.lane.b32.xlu0 %v421, 113
        %v840 = vpop.permute.xlu0 %839
        %vm841 = vcmp.lt.s32.totalorder %v447, 113
        %v842 = vsel %vm841, %v826, %v834
        %v843 = vsel %vm841, %v828, %v836
        %v844 = vsel %vm841, %v830, %v838
        %v845 = vsel %vm841, %v832, %v840
        %v846 = vsel %vm841, %v834, %v826
        %v847 = vsel %vm841, %v836, %v828
        %v848 = vsel %vm841, %v838, %v830
        %v849 = vsel %vm841, %v840, %v832
        %850 = vset.pattern.permute.xlu0 6
        %851 = vperm.xlu0 %850, %v422
        %v852 = vpop.permute.xlu0 %851
        %854 = vset.pattern.permute.xlu0 6
        %855 = vperm.xlu0 %854, %v423
        %v856 = vpop.permute.xlu0 %855
        %858 = vset.pattern.permute.xlu0 6
        %859 = vperm.xlu0 %858, %v424
        %v860 = vpop.permute.xlu0 %859
        %862 = vset.pattern.permute.xlu0 6
        %863 = vperm.xlu0 %862, %v425
        %v864 = vpop.permute.xlu0 %863
        %v866 = vmul.f32 %v842, %v852
        %v867 = vmul.f32 %v846, %v852
        %v868 = vmul.f32 %v843, %v856
        %v869 = vmul.f32 %v847, %v856
        %v870 = vmul.f32 %v844, %v860
        %v871 = vmul.f32 %v848, %v860
        %v872 = vmul.f32 %v845, %v864
        %v873 = vmul.f32 %v849, %v864
        %v874 = vlaneseq
        %v875 = vshrl.u32 %v874, 7
        %v876 = vsub.s32 6, %v875
        %v877 = vrot.slane %v426, %v876
        %v878 = vlaneseq
        %v879 = vshrl.u32 %v878, 7
        %v880 = vsub.s32 6, %v879
        %v881 = vrot.slane %v427, %v880
        %v882 = vmul.f32 %v866, %v877
        %v883 = vmul.f32 %v867, %v881
        %v884 = vmul.f32 %v868, %v877
        %v885 = vmul.f32 %v869, %v881
        %v886 = vmul.f32 %v870, %v877
        %v887 = vmul.f32 %v871, %v881
        %v888 = vmul.f32 %v872, %v877
        %v889 = vmul.f32 %v873, %v881
        %v890 = vadd.f32 %v817, %v882
        %v891 = vadd.f32 %v818, %v883
        %v892 = vadd.f32 %v819, %v884
        %v893 = vadd.f32 %v820, %v885
        %v894 = vadd.f32 %v821, %v886
        %v895 = vadd.f32 %v822, %v887
        %v896 = vadd.f32 %v823, %v888
        %v897 = vadd.f32 %v824, %v889
        %898 = vrot.lane.b32.xlu0 %v414, 112
        %v899 = vpop.permute.xlu0 %898
        %900 = vrot.lane.b32.xlu0 %v416, 112
        %v901 = vpop.permute.xlu0 %900
        %902 = vrot.lane.b32.xlu0 %v418, 112
        %v903 = vpop.permute.xlu0 %902
        %904 = vrot.lane.b32.xlu0 %v420, 112
        %v905 = vpop.permute.xlu0 %904
        %906 = vrot.lane.b32.xlu0 %v415, 112
        %v907 = vpop.permute.xlu0 %906
        %908 = vrot.lane.b32.xlu0 %v417, 112
        %v909 = vpop.permute.xlu0 %908
        %910 = vrot.lane.b32.xlu0 %v419, 112
        %v911 = vpop.permute.xlu0 %910
        %912 = vrot.lane.b32.xlu0 %v421, 112
        %v913 = vpop.permute.xlu0 %912
        %vm914 = vcmp.lt.s32.totalorder %v447, 112
        %v915 = vsel %vm914, %v899, %v907
        %v916 = vsel %vm914, %v901, %v909
        %v917 = vsel %vm914, %v903, %v911
        %v918 = vsel %vm914, %v905, %v913
        %v919 = vsel %vm914, %v907, %v899
        %v920 = vsel %vm914, %v909, %v901
        %v921 = vsel %vm914, %v911, %v903
        %v922 = vsel %vm914, %v913, %v905
        %923 = vset.pattern.permute.xlu0 7
        %924 = vperm.xlu0 %923, %v422
        %v925 = vpop.permute.xlu0 %924
        %927 = vset.pattern.permute.xlu0 7
        %928 = vperm.xlu0 %927, %v423
        %v929 = vpop.permute.xlu0 %928
        %931 = vset.pattern.permute.xlu0 7
        %932 = vperm.xlu0 %931, %v424
        %v933 = vpop.permute.xlu0 %932
        %935 = vset.pattern.permute.xlu0 7
        %936 = vperm.xlu0 %935, %v425
        %v937 = vpop.permute.xlu0 %936
        %v939 = vmul.f32 %v915, %v925
        %v940 = vmul.f32 %v919, %v925
        %v941 = vmul.f32 %v916, %v929
        %v942 = vmul.f32 %v920, %v929
        %v943 = vmul.f32 %v917, %v933
        %v944 = vmul.f32 %v921, %v933
        %v945 = vmul.f32 %v918, %v937
        %v946 = vmul.f32 %v922, %v937
        %v947 = vlaneseq
        %v948 = vshrl.u32 %v947, 7
        %v949 = vsub.s32 7, %v948
        %v950 = vrot.slane %v426, %v949
        %v951 = vlaneseq
        %v952 = vshrl.u32 %v951, 7
        %v953 = vsub.s32 7, %v952
        %v954 = vrot.slane %v427, %v953
        %v955 = vmul.f32 %v939, %v950
        %v956 = vmul.f32 %v940, %v954
        %v957 = vmul.f32 %v941, %v950
        %v958 = vmul.f32 %v942, %v954
        %v959 = vmul.f32 %v943, %v950
        %v960 = vmul.f32 %v944, %v954
        %v961 = vmul.f32 %v945, %v950
        %v962 = vmul.f32 %v946, %v954
        %v963 = vadd.f32 %v890, %v955
        %v964 = vadd.f32 %v891, %v956
        %v965 = vadd.f32 %v892, %v957
        %v966 = vadd.f32 %v893, %v958
        %v967 = vadd.f32 %v894, %v959
        %v968 = vadd.f32 %v895, %v960
        %v969 = vadd.f32 %v896, %v961
        %v970 = vadd.f32 %v897, %v962
        %971 = vrot.lane.b32.xlu0 %v414, 111
        %v972 = vpop.permute.xlu0 %971
        %973 = vrot.lane.b32.xlu0 %v416, 111
        %v974 = vpop.permute.xlu0 %973
        %975 = vrot.lane.b32.xlu0 %v418, 111
        %v976 = vpop.permute.xlu0 %975
        %977 = vrot.lane.b32.xlu0 %v420, 111
        %v978 = vpop.permute.xlu0 %977
        %979 = vrot.lane.b32.xlu0 %v415, 111
        %v980 = vpop.permute.xlu0 %979
        %981 = vrot.lane.b32.xlu0 %v417, 111
        %v982 = vpop.permute.xlu0 %981
        %983 = vrot.lane.b32.xlu0 %v419, 111
        %v984 = vpop.permute.xlu0 %983
        %985 = vrot.lane.b32.xlu0 %v421, 111
        %v986 = vpop.permute.xlu0 %985
        %vm987 = vcmp.lt.s32.totalorder %v447, 111
        %v988 = vsel %vm987, %v972, %v980
        %v989 = vsel %vm987, %v974, %v982
        %v990 = vsel %vm987, %v976, %v984
        %v991 = vsel %vm987, %v978, %v986
        %v992 = vsel %vm987, %v980, %v972
        %v993 = vsel %vm987, %v982, %v974
        %v994 = vsel %vm987, %v984, %v976
        %v995 = vsel %vm987, %v986, %v978
        %996 = vset.pattern.permute.xlu0 8
        %997 = vperm.xlu0 %996, %v422
        %v998 = vpop.permute.xlu0 %997
        %1000 = vset.pattern.permute.xlu0 8
        %1001 = vperm.xlu0 %1000, %v423
        %v1002 = vpop.permute.xlu0 %1001
        %1004 = vset.pattern.permute.xlu0 8
        %1005 = vperm.xlu0 %1004, %v424
        %v1006 = vpop.permute.xlu0 %1005
        %1008 = vset.pattern.permute.xlu0 8
        %1009 = vperm.xlu0 %1008, %v425
        %v1010 = vpop.permute.xlu0 %1009
        %v1012 = vmul.f32 %v988, %v998
        %v1013 = vmul.f32 %v992, %v998
        %v1014 = vmul.f32 %v989, %v1002
        %v1015 = vmul.f32 %v993, %v1002
        %v1016 = vmul.f32 %v990, %v1006
        %v1017 = vmul.f32 %v994, %v1006
        %v1018 = vmul.f32 %v991, %v1010
        %v1019 = vmul.f32 %v995, %v1010
        %v1020 = vlaneseq
        %v1021 = vshrl.u32 %v1020, 7
        %v1022 = vsub.s32 0, %v1021
        %v1023 = vrot.slane %v428, %v1022
        %v1024 = vlaneseq
        %v1025 = vshrl.u32 %v1024, 7
        %v1026 = vsub.s32 0, %v1025
        %v1027 = vrot.slane %v429, %v1026
        %v1028 = vmul.f32 %v1012, %v1023
        %v1029 = vmul.f32 %v1013, %v1027
        %v1030 = vmul.f32 %v1014, %v1023
        %v1031 = vmul.f32 %v1015, %v1027
        %v1032 = vmul.f32 %v1016, %v1023
        %v1033 = vmul.f32 %v1017, %v1027
        %v1034 = vmul.f32 %v1018, %v1023
        %v1035 = vmul.f32 %v1019, %v1027
        %v1036 = vadd.f32 %v963, %v1028
        %v1037 = vadd.f32 %v964, %v1029
        %v1038 = vadd.f32 %v965, %v1030
        %v1039 = vadd.f32 %v966, %v1031
        %v1040 = vadd.f32 %v967, %v1032
        %v1041 = vadd.f32 %v968, %v1033
        %v1042 = vadd.f32 %v969, %v1034
        %v1043 = vadd.f32 %v970, %v1035
        %v1044 = vld [vmem:[%s6] sm:$0xff]
        %v1045 = vld [vmem:[%s6 + $0x8] sm:$0xff]
        %v1046 = vld [vmem:[%s6 + $0x10] sm:$0xff]
        %v1047 = vld [vmem:[%s6 + $0x18] sm:$0xff]
        %1049 = vset.pattern.permute.xlu0 0
        %1050 = vperm.xlu0 %1049, %v1044
        %v1051 = vpop.permute.xlu0 %1050
        %1054 = vset.pattern.permute.xlu0 0
        %1055 = vperm.xlu0 %1054, %v1045
        %v1056 = vpop.permute.xlu0 %1055
        %1059 = vset.pattern.permute.xlu0 0
        %1060 = vperm.xlu0 %1059, %v1046
        %v1061 = vpop.permute.xlu0 %1060
        %1064 = vset.pattern.permute.xlu0 0
        %1065 = vperm.xlu0 %1064, %v1047
        %v1066 = vpop.permute.xlu0 %1065
        %v1068 = vadd.f32 %v1036, %v1051
        %v1069 = vadd.f32 %v1037, %v1051
        %v1070 = vadd.f32 %v1038, %v1056
        %v1071 = vadd.f32 %v1039, %v1056
        %v1072 = vadd.f32 %v1040, %v1061
        %v1073 = vadd.f32 %v1041, %v1061
        %v1074 = vadd.f32 %v1042, %v1066
        %v1075 = vadd.f32 %v1043, %v1066
        %v1076 = vmax.f32 %v1068, 0.0
        %v1077 = vmax.f32 %v1069, 0.0
        %v1078 = vmax.f32 %v1070, 0.0
        %v1079 = vmax.f32 %v1071, 0.0
        %v1080 = vmax.f32 %v1072, 0.0
        %v1081 = vmax.f32 %v1073, 0.0
        %v1082 = vmax.f32 %v1074, 0.0
        %v1083 = vmax.f32 %v1075, 0.0
        %v1084 = vld [vmem:[%s3] sm:$0xf]
        %v1085 = vpack.c.bf16 %v1078, %v1076
        %v1086 = vpack.c.bf16 %v1079, %v1077
        %v1087 = vpack.c.bf16 %v1082, %v1080
        %v1088 = vpack.c.bf16 %v1083, %v1081
        %v1089 = vld [vmem:[%s7] sm:$0xff]
        %1091 = vset.pattern.permute.xlu0 0
        %1092 = vperm.xlu0 %1091, %v1089
        %v1093 = vpop.permute.xlu0 %1092
        %vm1095 = vcmask 261120
        %v1097 = vsel %vm1095, %v1084, 0
        %1099 = vmatprep.subr.bf16.mxu0 0
        %1100 = vmatpush1.bf16.msra.mxu0 0
        %1101 = vmatprep.subr.bf16.mxu0 0
        %1102 = vmatpush1.bf16.msra.mxu0 0
        %1103 = vmatprep.subr.bf16.mxu0 0
        %1104 = vmatpush1.bf16.msra.mxu0 0
        %1105 = vmatprep.subr.bf16.mxu0 0
        %1106 = vmatpush1.bf16.msra.mxu0 0
        %1107 = vmatprep.subr.bf16.mxu0 0
        %1108 = vmatpush1.bf16.msra.mxu0 0
        %1109 = vmatprep.subr.bf16.mxu0 0
        %1110 = vmatpush1.bf16.msra.mxu0 0
        %1111 = vmatprep.subr.bf16.mxu0 %v1088
        %1112 = vmatpush1.bf16.msra.mxu0 %v1087
        %1113 = vmatprep.subr.bf16.mxu0 %v1086
        %1114 = vmatpush1.bf16.msra.mxu0 %v1085
        %1115 = vmatprep.subr.bf16.mxu0 0
        %1116 = vmatpush2.bf16.msra.mxu0 0
        %1117 = vmatprep.subr.bf16.mxu0 0
        %1118 = vmatpush2.bf16.msra.mxu0 0
        %1119 = vmatprep.subr.bf16.mxu0 0
        %1120 = vmatpush2.bf16.msra.mxu0 0
        %1121 = vmatprep.subr.bf16.mxu0 0
        %1122 = vmatpush2.bf16.msra.mxu0 0
        %1123 = vmatprep.subr.bf16.mxu0 0
        %1124 = vmatpush2.bf16.msra.mxu0 0
        %1125 = vmatprep.subr.bf16.mxu0 0
        %1126 = vmatpush2.bf16.msra.mxu0 0
        %1127 = vmatprep.subr.bf16.mxu0 0
        %1128 = vmatpush2.bf16.msra.mxu0 0
        %1129 = vmatprep.subr.bf16.mxu0 0
        %1130 = vmatpush2.bf16.msra.mxu0 0
        %1131 = vmatprep.mubr.bf16.mxu0 0
        %1132 = vmatmul.mubr.bf16.gmra.mxu0 %v1097
        %v1133 = vpop.f32.mrf.mxu0
        %v1134 = vadd.f32 %v1093, %v1133
        %v1135 = vpop.f32.mrf.mxu0
        %v1136 = vadd.f32 %v1093, %v1135
        %v1137 = vpop.f32.mrf.mxu0
        %v1138 = vpop.f32.mrf.mxu0
        %1139 = vdwg.mxu0
        %v1140 = vadd.f32 %v1134, %v305
        %v1141 = vadd.f32 %v1136, %v306
        %1142 = vst [vmem:[%s298] sm:$0xff] %v1140
        %1143 = vst [vmem:[%s298 + $0x8] sm:$0xff] %v1141
        %s1144 = sand.u32 %s203, 1
        %s1145 = scalar_lea.sflag [#allocation3], %s1144
        %s1146 = sand.u32 %s203, 1
        %s1147 = smul.addr %s1146, 16
        %s1148 = scalar_lea.vmem [#allocation2], %s1147
        // Predicated region
        $region53: #{tpu_custom_call.1} parent=51 // pred_check
          %p1149 = pneg %p213
        $region54: #{tpu_custom_call.1} parent=51 // pred_check_branch
          %1151 = sbr.rel (%p1149) target = $region56
        $region55: #{tpu_custom_call.1} parent=51 // pred_region
          %s1153 = ssub.s32 256, 256
          %1154 = vsyncadd %s1145, %s1153
          %s1155 = smul.addr %s22, 2
          %s1156 = smul.addr %s1155, 128
          %s1157 = scalar_lea.hbm %s8, %s1156
          %s1159 = sshll.u32 %s1148, 4
          %s1160 = int_to_ptr.vmem [resolvable:$true] %s1159
          %1162 = dma.vmem_to_hbm [thread:$0]  %s1160, 256, %s1157, %s1145
        $region56: #{tpu_custom_call.1} parent=51 // pred_fallthru
          _
      $region52: #{tpu_custom_call.1} parent=5 // pred_fallthru
        _
      %p1163 = scmp.le.s32.totalorder 2, %s17
      // Predicated region
      $region57: #{tpu_custom_call.1} parent=5 // pred_check
        %p1164 = pneg %p1163
      $region58: #{tpu_custom_call.1} parent=5 // pred_check_branch
        %1166 = sbr.rel (%p1164) target = $region60
      $region59: #{tpu_custom_call.1} parent=5 // pred_region
        %s1167 = ssub.s32 %s17, 2
        // Predicated region
        $region61: #{tpu_custom_call.1} parent=59 // pred_check
          %p1168 = pneg %p219
        $region62: #{tpu_custom_call.1} parent=59 // pred_check_branch
          %1170 = sbr.rel (%p1168) target = $region64
        $region63: #{tpu_custom_call.1} parent=59 // pred_region
          %s1171 = sand.u32 %s204, 1
          %s1172 = scalar_lea.sflag [#allocation3], %s1171
          %s1173 = sand.u32 %s204, 1
          %s1174 = smul.addr %s1173, 16
          %s1175 = scalar_lea.vmem [#allocation2], %s1174
          %1176 = dma.done %s1172, 256
        $region64: #{tpu_custom_call.1} parent=59 // pred_fallthru
          _
      $region60: #{tpu_custom_call.1} parent=5 // pred_fallthru
        _
    $region6: #{tpu_custom_call.1} parent=1 // loop_footer
      %s21 = sadd.s32 1, %s17
    $region7: #{tpu_custom_call.1} parent=1 // loop_footer_branch
      %16 = sbr.rel target = $region3
    $region8: #{tpu_custom_call.1} parent=1 // loop_exit
      _
    %1177 = vsyncpa [#allocation3], 1
    %s1178 = scalar_lea.sflag [#allocation3], 1
    %1179 = vsyncpa %s1178, 1

</llo_original>
